<compile_context>
chip_gen: v7x
topology: tpu7x:2x2x1
jax: 0.10.0
libtpu: 0.0.40
codegen_flags: <defaults>
</compile_context>

<pallas_src>
import functools

import jax
import jax.numpy as jnp
import numpy as np
from jax import lax
from jax.experimental import pallas as pl
from jax.experimental.pallas import tpu as pltpu


# ---------------------------------------------------------------------------
# Parity routing: a 3x3 "valid" conv applied to a full-resolution image stored
# as 2x2 parity planes (pixel-shuffle form).  Tap d at output parity r reads
# plane parity p = (r+d) % 2 at plane offset i = (r+d) // 2.
# R[r, d, i, p] = 1 iff (i, p) == ((r+d)//2, (r+d)%2).
# ---------------------------------------------------------------------------
def _routing_table():
    R = np.zeros((2, 3, 2, 2), np.float32)
    for r in range(2):
        for d in range(3):
            R[r, d, (r + d) // 2, (r + d) % 2] = 1.0
    return jnp.asarray(R)


def _upstep_kernel(xin_ref, w1_ref, b1_ref, w2_ref, b2_ref, out_ref, h1_ref,
                   *, plane_w, pad, relu):
    # Channel-major, spatial-as-lanes layout (per grid step):
    #   xin_ref : (1, Cxin, Lin)   Cxin = 4*Cd + Cin packed input channels,
    #                              Lin  = B*H*W + 2*pad flat spatial columns (zero pad)
    #   w1_ref  : (C4, 4*Cxin)     merged conv1 weights (ConvTranspose2d folded in)
    #   b1_ref  : (C4, 1)          effective conv1 bias (f32)
    #   w2_ref  : (C4, 4*C4)       merged conv2 weights
    #   b2_ref  : (C4, 1)          conv2 bias (f32)
    #   out_ref : (1, C4, L)       parity-packed conv2 output, L = B*H*W (lane-dense)
    #   h1_ref  : (C4, L + pad)    f32 VMEM scratch for the conv1 output
    C4, L = out_ref.shape[1], out_ref.shape[2]
    l2 = L + pad                              # conv1 output width (padded extent)
    shifts = (0, 1, plane_w, plane_w + 1)     # plane offsets (di, dj) -> di*W + dj

    # ---- Stage A: ConvTranspose2d folded into the first 3x3 conv -> ONE GEMM ----
    # The four plane offsets are lane-offset loads stacked along sublanes at
    # 8-aligned offsets, giving a K = 4*Cxin contraction in a single MXU pass.
    s1 = jnp.concatenate([xin_ref[0, :, m:m + l2] for m in shifts], axis=0)
    h1 = jnp.dot(w1_ref[...], s1, preferred_element_type=jnp.float32)
    h1 = h1 + b1_ref[...]                     # single broadcast bias add
    if relu:
        h1 = jnp.maximum(h1, 0.0)
    h1_ref[...] = h1                          # one store; padded cols never read back

    # ---- Stage B: second 3x3 conv -> ONE GEMM (K = 4*C4) ------------------------
    s2 = jnp.concatenate([h1_ref[:, m:m + L] for m in shifts],
                         axis=0).astype(w2_ref.dtype)
    y = jnp.dot(w2_ref[...], s2, preferred_element_type=jnp.float32)
    y = y + b2_ref[...]
    if relu:
        y = jnp.maximum(y, 0.0)
    out_ref[0] = y                            # lane-dense (C4, B*H*W) store


def up_step_forward(params, x_nchw, xdown_nchw, with_relu=True,
                    batch_block=None, compute_dtype=jnp.float32):
    """Fused upStep forward.  x_nchw: (N, inC, H, W), xdown_nchw: (N, inC-outC, 2H, 2W).
    Returns (N, outC, 2H-4, 2W-4) float32, matching the PyTorch module."""
    N, Cin, H, W = x_nchw.shape
    Cout = params["wt"].shape[1]
    Cd = Cin - Cout
    C4, Cd4 = 4 * Cout, 4 * Cd
    Cxin = Cd4 + Cin
    HW = H * W
    assert xdown_nchw.shape == (N, Cd, 2 * H, 2 * W), xdown_nchw.shape

    # Batch blocking: fold B images per grid step into the GEMM spatial/lane dim.
    if batch_block is None:
        batch_block = max(b for b in range(1, min(N, 8) + 1) if N % b == 0)
    B = batch_block
    assert N % B == 0
    Bg = N // B                       # grid steps (keep >= 2 on v7x when N allows)
    L = B * HW                        # flat spatial columns per grid step
    PADC = W + 8                      # column padding so all window reads stay in-bounds
    Lin = L + 2 * PADC

    # ---- input layout plumbing (one XLA pass; drop it entirely if adjacent layers
    #      keep this packed channel-major layout between kernels) -------------------
    xdp_t = jnp.transpose(
        xdown_nchw.reshape(Bg, B, Cd, H, 2, W, 2),       # (nb, b, c, i, r, j, s)
        (0, 4, 6, 2, 1, 3, 5)).reshape(Bg, Cd4, L)        # channel = (2r+s)*Cd + c
    x_t = jnp.transpose(
        x_nchw.reshape(Bg, B, Cin, H, W),                 # (nb, b, c, i, j)
        (0, 2, 1, 3, 4)).reshape(Bg, Cin, L)
    xin_t = jnp.concatenate([xdp_t, x_t], axis=1).astype(compute_dtype)
    xin_t = jnp.concatenate(
        [xin_t, jnp.zeros((Bg, Cxin, Lin - L), compute_dtype)], axis=-1)

    # ---- one-time weight prep: parity-routed, transpose-conv-folded, merged -------
    R = _routing_table()
    wt_mat = jnp.transpose(params["wt"], (0, 2, 3, 1)).reshape(Cin, C4)
    btp = jnp.tile(params["bt"], 4).reshape(1, C4)
    w1d, w1u = params["w1"][:, :Cd], params["w1"][:, Cd:]
    a1d = jnp.einsum("rhip,swjq,ochw->ijpqcrso", R, R, w1d).reshape(4, Cd4, C4)
    a1u = jnp.einsum("rhip,swjq,ochw->ijpqcrso", R, R, w1u).reshape(4, C4, C4)
    a2 = jnp.einsum("rhip,swjq,ochw->ijpqcrso", R, R, params["w2"]).reshape(4, C4, C4)
    a1x = jnp.einsum("ck,mko->mco", wt_mat, a1u)           # fold ConvTranspose2d
    w1_big = jnp.concatenate(
        [jnp.concatenate([a1d[m], a1x[m]], axis=0) for m in range(4)], axis=0)
    w1_t = w1_big.T.astype(compute_dtype)                  # (C4, 4*Cxin)
    w2_t = a2.reshape(4 * C4, C4).T.astype(compute_dtype)  # (C4, 4*C4)
    b1_t = (jnp.tile(params["b1"], 4).reshape(1, C4)
            + btp @ a1u.sum(axis=0)).reshape(C4, 1).astype(jnp.float32)
    b2_t = jnp.tile(params["b2"], 4).reshape(C4, 1).astype(jnp.float32)

    outp = pl.pallas_call(
        functools.partial(_upstep_kernel, plane_w=W, pad=PADC, relu=with_relu),
        out_shape=jax.ShapeDtypeStruct((Bg, C4, L), jnp.float32),
        grid=(Bg,),
        in_specs=[
            pl.BlockSpec((1, Cxin, Lin), lambda n: (n, 0, 0)),
            pl.BlockSpec((C4, 4 * Cxin), lambda n: (0, 0)),
            pl.BlockSpec((C4, 1), lambda n: (0, 0)),
            pl.BlockSpec((C4, 4 * C4), lambda n: (0, 0)),
            pl.BlockSpec((C4, 1), lambda n: (0, 0)),
        ],
        out_specs=pl.BlockSpec((1, C4, L), lambda n: (n, 0, 0)),
        scratch_shapes=[pltpu.VMEM((C4, L + PADC), jnp.float32)],
        compiler_params=pltpu.CompilerParams(dimension_semantics=("parallel",)),
    )(xin_t, w1_t, b1_t, w2_t, b2_t)

    # ---- crop the valid plane region and pixel-shuffle back to NCHW ---------------
    Ho, Wo = H - 2, W - 2
    out = outp.reshape(Bg, 2, 2, Cout, B, H, W)[:, :, :, :, :, :Ho, :Wo]
    out = jnp.transpose(out, (0, 4, 3, 5, 1, 6, 2))        # (nb, b, o, i, r, j, s)
    return out.reshape(N, Cout, 2 * Ho, 2 * Wo)


# ---------------------------------------------------------------------------
# Pure-JAX reference (direct port of the torch module) for correctness check.
# ---------------------------------------------------------------------------
def up_step_reference(params, x_nchw, xdown_nchw, with_relu=True):
    x = jnp.transpose(x_nchw, (0, 2, 3, 1))
    xd = jnp.transpose(xdown_nchw, (0, 2, 3, 1))
    wt = params["wt"]                                # (Cin, Cout, 2, 2)
    N, H, W, _ = x.shape
    Cout = wt.shape[1]
    y = jnp.einsum("nhwc,coij->nhiwjo", x, wt).reshape(N, 2 * H, 2 * W, Cout)
    y = y + params["bt"]
    cat = jnp.concatenate([xd, y], axis=-1)

    def conv(xx, w_t, b_t):
        w = jnp.transpose(w_t, (2, 3, 1, 0))
        out = lax.conv_general_dilated(
            xx, w, (1, 1), "VALID",
            dimension_numbers=("NHWC", "HWIO", "NHWC"))
        return out + b_t

    h = conv(cat, params["w1"], params["b1"])
    if with_relu:
        h = jnp.maximum(h, 0.0)
    h = conv(h, params["w2"], params["b2"])
    if with_relu:
        h = jnp.maximum(h, 0.0)
    return jnp.transpose(h, (0, 3, 1, 2))


def init_params(key, inC, outC):
    ks = jax.random.split(key, 6)
    return {
        # ConvTranspose2d(inC, outC, k=2, s=2): weight (inC, outC, 2, 2)
        "wt": 0.1 * jax.random.normal(ks[0], (inC, outC, 2, 2), jnp.float32),
        "bt": 0.1 * jax.random.normal(ks[1], (outC,), jnp.float32),
        # Conv2d(inC, outC, 3): weight (outC, inC, 3, 3)
        "w1": 0.1 * jax.random.normal(ks[2], (outC, inC, 3, 3), jnp.float32),
        "b1": 0.1 * jax.random.normal(ks[3], (outC,), jnp.float32),
        # Conv2d(outC, outC, 3): weight (outC, outC, 3, 3)
        "w2": 0.1 * jax.random.normal(ks[4], (outC, outC, 3, 3), jnp.float32),
        "b2": 0.1 * jax.random.normal(ks[5], (outC,), jnp.float32),
    }


if __name__ == "__main__":
    inC, outC = 8, 4
    N, H, W = 2, 8, 8                   # x spatial; x_down is (2H, 2W)
    key = jax.random.PRNGKey(0)
    kx, kd, kp = jax.random.split(key, 3)

    x = jax.random.normal(kx, (N, inC, H, W), jnp.float32)                # NCHW
    x_down = jax.random.normal(kd, (N, inC - outC, 2 * H, 2 * W), jnp.float32)
    params = init_params(kp, inC, outC)

    out = jax.block_until_ready(up_step_forward(params, x, x_down, with_relu=True))
    ref = jax.block_until_ready(up_step_reference(params, x, x_down, with_relu=True))

    assert out.shape == (N, outC, 2 * H - 4, 2 * W - 4), out.shape
    err = float(jnp.max(jnp.abs(out - ref)))
    assert jnp.allclose(out, ref, atol=1e-4, rtol=1e-4), err
    print("KERNEL_OK")
</pallas_src>

<mosaic_0001>
module attributes {stable_mosaic.version = 11 : i64} {
  func.func @_upstep_kernel(%arg0: i32, %arg1: memref<1x24x160xf32, #tpu.memory_space<vmem>>, %arg2: memref<16x96xf32, #tpu.memory_space<vmem>>, %arg3: memref<16x1xf32, #tpu.memory_space<vmem>>, %arg4: memref<16x64xf32, #tpu.memory_space<vmem>>, %arg5: memref<16x1xf32, #tpu.memory_space<vmem>>, %arg6: memref<1x16x128xf32, #tpu.memory_space<vmem>>, %arg7: memref<16x144xf32, #tpu.memory_space<vmem>>) attributes {dimension_semantics = [#tpu.dimension_semantics<parallel>], iteration_bounds = array<i64: 1>, scalar_prefetch = 0 : i64, scratch_operands = 1 : i64, tpu.core_type = #tpu.core_type<tc>, window_params = [{transform_indices = @transform_0, window_bounds = array<i64: 1, 24, 160>}, {pipeline_mode = #tpu.pipeline_mode<synchronous>, transform_indices = @transform_1, window_bounds = array<i64: 16, 96>}, {pipeline_mode = #tpu.pipeline_mode<synchronous>, transform_indices = @transform_2, window_bounds = array<i64: 16, 1>}, {pipeline_mode = #tpu.pipeline_mode<synchronous>, transform_indices = @transform_3, window_bounds = array<i64: 16, 64>}, {pipeline_mode = #tpu.pipeline_mode<synchronous>, transform_indices = @transform_4, window_bounds = array<i64: 16, 1>}, {transform_indices = @transform_5, window_bounds = array<i64: 1, 16, 128>}]} {
    %c0 = arith.constant 0 : index
    %c0_0 = arith.constant 0 : index
    %c0_1 = arith.constant 0 : index
    %0 = vector.load %arg1[%c0, %c0_0, %c0_1] : memref<1x24x160xf32, #tpu.memory_space<vmem>>, vector<1x24x144xf32>
    %1 = vector.shape_cast %0 : vector<1x24x144xf32> to vector<24x144xf32>
    %c0_2 = arith.constant 0 : index
    %c0_3 = arith.constant 0 : index
    %c1 = arith.constant 1 : index
    %2 = vector.load %arg1[%c0_2, %c0_3, %c1] : memref<1x24x160xf32, #tpu.memory_space<vmem>>, vector<1x24x144xf32>
    %3 = vector.shape_cast %2 : vector<1x24x144xf32> to vector<24x144xf32>
    %c0_4 = arith.constant 0 : index
    %c0_5 = arith.constant 0 : index
    %c8 = arith.constant 8 : index
    %4 = vector.load %arg1[%c0_4, %c0_5, %c8] : memref<1x24x160xf32, #tpu.memory_space<vmem>>, vector<1x24x144xf32>
    %5 = vector.shape_cast %4 : vector<1x24x144xf32> to vector<24x144xf32>
    %c0_6 = arith.constant 0 : index
    %c0_7 = arith.constant 0 : index
    %c9 = arith.constant 9 : index
    %6 = vector.load %arg1[%c0_6, %c0_7, %c9] : memref<1x24x160xf32, #tpu.memory_space<vmem>>, vector<1x24x144xf32>
    %7 = vector.shape_cast %6 : vector<1x24x144xf32> to vector<24x144xf32>
    %8 = tpu.concatenate %1, %3, %5, %7 in 0 : vector<24x144xf32>, vector<24x144xf32>, vector<24x144xf32>, vector<24x144xf32> -> vector<96x144xf32>
    %c0_8 = arith.constant 0 : index
    %c0_9 = arith.constant 0 : index
    %9 = vector.load %arg2[%c0_8, %c0_9] : memref<16x96xf32, #tpu.memory_space<vmem>>, vector<16x96xf32>
    %cst = arith.constant dense<0.000000e+00> : vector<16x144xf32>
    %10 = tpu.matmul %9, %8, %cst {dimension_numbers = #tpu.dot_dimension_numbers<[1], [0], [0], [1], [0, 0, 1, 1], [], []>} : vector<16x96xf32>, vector<96x144xf32>, vector<16x144xf32> -> vector<16x144xf32>
    %c0_10 = arith.constant 0 : index
    %c0_11 = arith.constant 0 : index
    %11 = vector.load %arg3[%c0_10, %c0_11] : memref<16x1xf32, #tpu.memory_space<vmem>>, vector<16x1xf32>
    %12 = vector.broadcast %11 : vector<16x1xf32> to vector<16x144xf32>
    %13 = arith.addf %10, %12 : vector<16x144xf32>
    %cst_12 = arith.constant 0.000000e+00 : f32
    %14 = vector.broadcast %cst_12 : f32 to vector<16x144xf32>
    %15 = arith.maximumf %13, %14 : vector<16x144xf32>
    %c0_13 = arith.constant 0 : index
    %c0_14 = arith.constant 0 : index
    %16 = vector.load %arg7[%c0_13, %c0_14] : memref<16x144xf32, #tpu.memory_space<vmem>>, vector<16x144xf32>
    tpu.vector_store %arg7[%c0_13, %c0_14], %15 {strides = array<i32>} : memref<16x144xf32, #tpu.memory_space<vmem>>, vector<16x144xf32>,
    %c0_15 = arith.constant 0 : index
    %c0_16 = arith.constant 0 : index
    %17 = vector.load %arg7[%c0_15, %c0_16] : memref<16x144xf32, #tpu.memory_space<vmem>>, vector<16x128xf32>
    %c0_17 = arith.constant 0 : index
    %c1_18 = arith.constant 1 : index
    %18 = vector.load %arg7[%c0_17, %c1_18] : memref<16x144xf32, #tpu.memory_space<vmem>>, vector<16x128xf32>
    %c0_19 = arith.constant 0 : index
    %c8_20 = arith.constant 8 : index
    %19 = vector.load %arg7[%c0_19, %c8_20] : memref<16x144xf32, #tpu.memory_space<vmem>>, vector<16x128xf32>
    %c0_21 = arith.constant 0 : index
    %c9_22 = arith.constant 9 : index
    %20 = vector.load %arg7[%c0_21, %c9_22] : memref<16x144xf32, #tpu.memory_space<vmem>>, vector<16x128xf32>
    %21 = tpu.concatenate %17, %18, %19, %20 in 0 : vector<16x128xf32>, vector<16x128xf32>, vector<16x128xf32>, vector<16x128xf32> -> vector<64x128xf32>
    %c0_23 = arith.constant 0 : index
    %c0_24 = arith.constant 0 : index
    %22 = vector.load %arg4[%c0_23, %c0_24] : memref<16x64xf32, #tpu.memory_space<vmem>>, vector<16x64xf32>
    %cst_25 = arith.constant dense<0.000000e+00> : vector<16x128xf32>
    %23 = tpu.matmul %22, %21, %cst_25 {dimension_numbers = #tpu.dot_dimension_numbers<[1], [0], [0], [1], [0, 0, 1, 1], [], []>} : vector<16x64xf32>, vector<64x128xf32>, vector<16x128xf32> -> vector<16x128xf32>
    %c0_26 = arith.constant 0 : index
    %c0_27 = arith.constant 0 : index
    %24 = vector.load %arg5[%c0_26, %c0_27] : memref<16x1xf32, #tpu.memory_space<vmem>>, vector<16x1xf32>
    %25 = vector.broadcast %24 : vector<16x1xf32> to vector<16x128xf32>
    %26 = arith.addf %23, %25 : vector<16x128xf32>
    %cst_28 = arith.constant 0.000000e+00 : f32
    %27 = vector.broadcast %cst_28 : f32 to vector<16x128xf32>
    %28 = arith.maximumf %26, %27 : vector<16x128xf32>
    %c0_29 = arith.constant 0 : index
    %c0_30 = arith.constant 0 : index
    %c0_31 = arith.constant 0 : index
    %29 = vector.load %arg6[%c0_29, %c0_30, %c0_31] : memref<1x16x128xf32, #tpu.memory_space<vmem>>, vector<1x16x128xf32>
    %30 = vector.shape_cast %29 : vector<1x16x128xf32> to vector<16x128xf32>
    %31 = vector.shape_cast %28 : vector<16x128xf32> to vector<1x16x128xf32>
    tpu.vector_store %arg6[%c0_29, %c0_30, %c0_31], %31 {strides = array<i32>} : memref<1x16x128xf32, #tpu.memory_space<vmem>>, vector<1x16x128xf32>,
    return
  }
  func.func @transform_0(%arg0: i32) -> (i32, i32, i32) {
    %c0_i32 = arith.constant 0 : i32
    %c0_i32_0 = arith.constant 0 : i32
    %c0_i32_1 = arith.constant 0 : i32
    return %arg0, %c0_i32, %c0_i32_0 : i32, i32, i32
  }
  func.func @transform_1(%arg0: i32) -> (i32, i32) {
    %c0_i32 = arith.constant 0 : i32
    %c0_i32_0 = arith.constant 0 : i32
    %c0_i32_1 = arith.constant 0 : i32
    return %c0_i32, %c0_i32_0 : i32, i32
  }
  func.func @transform_2(%arg0: i32) -> (i32, i32) {
    %c0_i32 = arith.constant 0 : i32
    %c0_i32_0 = arith.constant 0 : i32
    %c0_i32_1 = arith.constant 0 : i32
    return %c0_i32, %c0_i32_0 : i32, i32
  }
  func.func @transform_3(%arg0: i32) -> (i32, i32) {
    %c0_i32 = arith.constant 0 : i32
    %c0_i32_0 = arith.constant 0 : i32
    %c0_i32_1 = arith.constant 0 : i32
    return %c0_i32, %c0_i32_0 : i32, i32
  }
  func.func @transform_4(%arg0: i32) -> (i32, i32) {
    %c0_i32 = arith.constant 0 : i32
    %c0_i32_0 = arith.constant 0 : i32
    %c0_i32_1 = arith.constant 0 : i32
    return %c0_i32, %c0_i32_0 : i32, i32
  }
  func.func @transform_5(%arg0: i32) -> (i32, i32, i32) {
    %c0_i32 = arith.constant 0 : i32
    %c0_i32_0 = arith.constant 0 : i32
    %c0_i32_1 = arith.constant 0 : i32
    return %arg0, %c0_i32, %c0_i32_0 : i32, i32, i32
  }
}

</mosaic_0001>

<llo_original>
// kernel: tpu_custom_call.1
$region0: #{tpu_custom_call.1}
  #allocation0 [shape = 'u32[]', space=smem, size = 0x4, offset = 0x4, fixed_abs, tag = 'smem constant byte address 0x4 - core index']
  #allocation1 [shape = 'u32[144,128]{1,0:T(1,128)}', space=vmem, size = 0x12000, scoped, tag = 'internal scratch']
  #allocation2 [shape = 'f32[16,144]{1,0:T(8,128)}', space=vmem, size = 0x4000, scoped, tag = 'scratch operand']
  %s0 = inlined_call_operand.hbm [shape: f32[1,24,160], index: 0, kind: input, shape index: {}]
  %s1 = inlined_call_operand.vmem [shape: f32[16,96], index: 1, kind: input, shape index: {}]
  %s2 = inlined_call_operand.vmem [shape: f32[16,1], index: 2, kind: input, shape index: {}]
  %s3 = inlined_call_operand.vmem [shape: f32[16,64], index: 3, kind: input, shape index: {}]
  %s4 = inlined_call_operand.vmem [shape: f32[16,1], index: 4, kind: input, shape index: {}]
  %s5 = inlined_call_operand.hbm [shape: f32[1,16,128], index: 5, kind: output, shape index: {}]
  %s6 = sld [smem:[#allocation0]]
  $region34: #{tpu_custom_call.1} parent=0
    _
  %s8 = ssub.s32 1, %s6
  %s9 = scalar_select 0, %s8, %s6
  $region1: #{tpu_custom_call.1} parent=0
    #allocation3 [shape = 'u8[24576]{0}', space=vmem, size = 0x6000, scoped, tag = 'input window, operand 0, single buffered']
    #allocation4 [shape = 's32[1]{0}', space=sflag, size = 0x4, scoped, tag = 'scoped memory for tpu_custom_call.1']
    #allocation5 [shape = 's32[1]{0}', space=sflag, size = 0x4, scoped, tag = 'scoped memory for tpu_custom_call.1']
    #allocation6 [shape = 'u8[8192]{0}', space=vmem, size = 0x2000, scoped, tag = 'output window, operand 0, single buffered']
    %10 = vsyncpa [#allocation4], 0
    %11 = vsyncpa [#allocation5], 0
    // Predicated region
    $region2: #{tpu_custom_call.1} parent=1 // pred_check
      _
    $region3: #{tpu_custom_call.1} parent=1 // pred_check_branch
      %13 = sbr.rel (0) target = $region5
    $region4: #{tpu_custom_call.1} parent=1 // pred_region
      %s15 = ssub.s32 768, 768
      %16 = vsyncadd [#allocation4], %s15
      %s17 = sshll.u32 [#allocation3], 4
      %s18 = int_to_ptr.vmem [resolvable:$true] %s17
      %23 = dma.hbm_to_vmem [thread:$0]  %s0, 768, %s18, [#allocation4], 256, 256, 16
    $region5: #{tpu_custom_call.1} parent=1 // pred_fallthru
      _
    // Predicated region
    $region6: #{tpu_custom_call.1} parent=1 // pred_check
      _
    $region7: #{tpu_custom_call.1} parent=1 // pred_check_branch
      %25 = sbr.rel (0) target = $region9
    $region8: #{tpu_custom_call.1} parent=1 // pred_region
      _
    $region9: #{tpu_custom_call.1} parent=1 // pred_fallthru
      _
    // Predicated region
    $region10: #{tpu_custom_call.1} parent=1 // pred_check
      _
    $region11: #{tpu_custom_call.1} parent=1 // pred_check_branch
      %27 = sbr.rel (0) target = $region13
    $region12: #{tpu_custom_call.1} parent=1 // pred_region
      _
    $region13: #{tpu_custom_call.1} parent=1 // pred_fallthru
      _
    // Predicated region
    $region14: #{tpu_custom_call.1} parent=1 // pred_check
      _
    $region15: #{tpu_custom_call.1} parent=1 // pred_check_branch
      %29 = sbr.rel (0) target = $region17
    $region16: #{tpu_custom_call.1} parent=1 // pred_region
      _
    $region17: #{tpu_custom_call.1} parent=1 // pred_fallthru
      _
    // Predicated region
    $region18: #{tpu_custom_call.1} parent=1 // pred_check
      _
    $region19: #{tpu_custom_call.1} parent=1 // pred_check_branch
      %31 = sbr.rel (0) target = $region21
    $region20: #{tpu_custom_call.1} parent=1 // pred_region
      _
    $region21: #{tpu_custom_call.1} parent=1 // pred_fallthru
      _
    // Predicated region
    $region22: #{tpu_custom_call.1} parent=1 // pred_check
      _
    $region23: #{tpu_custom_call.1} parent=1 // pred_check_branch
      %33 = sbr.rel (0) target = $region25
    $region24: #{tpu_custom_call.1} parent=1 // pred_region
      %34 = dma.done [#allocation4], 768
    $region25: #{tpu_custom_call.1} parent=1 // pred_fallthru
      _
    %v35 = vld [vmem:[#allocation3] sm:$0xff]
    %v36 = vld [vmem:[#allocation3 + $0x8] sm:$0xff]
    %v37 = vld [vmem:[#allocation3 + $0x10] sm:$0xff]
    %v38 = vld [vmem:[#allocation3 + $0x18] sm:$0xff]
    %v39 = vld [vmem:[#allocation3 + $0x20] sm:$0xff]
    %v40 = vld [vmem:[#allocation3 + $0x28] sm:$0xff]
    %47 = vrot.lane.b32.xlu0 %v35, 127
    %v48 = vpop.permute.xlu0 %47
    %49 = vrot.lane.b32.xlu0 %v36, 127
    %v50 = vpop.permute.xlu0 %49
    %51 = vrot.lane.b32.xlu0 %v37, 127
    %v52 = vpop.permute.xlu0 %51
    %53 = vrot.lane.b32.xlu0 %v38, 127
    %v54 = vpop.permute.xlu0 %53
    %55 = vrot.lane.b32.xlu0 %v39, 127
    %v56 = vpop.permute.xlu0 %55
    %57 = vrot.lane.b32.xlu0 %v40, 127
    %v58 = vpop.permute.xlu0 %57
    %vm59 = vcmask 1039360
    %v60 = vsel %vm59, %v48, %v50
    %v61 = vsel %vm59, %v52, %v54
    %v62 = vsel %vm59, %v56, %v58
    %69 = vrot.lane.b32.xlu0 %v35, 120
    %v70 = vpop.permute.xlu0 %69
    %71 = vrot.lane.b32.xlu0 %v36, 120
    %v72 = vpop.permute.xlu0 %71
    %73 = vrot.lane.b32.xlu0 %v37, 120
    %v74 = vpop.permute.xlu0 %73
    %75 = vrot.lane.b32.xlu0 %v38, 120
    %v76 = vpop.permute.xlu0 %75
    %77 = vrot.lane.b32.xlu0 %v39, 120
    %v78 = vpop.permute.xlu0 %77
    %79 = vrot.lane.b32.xlu0 %v40, 120
    %v80 = vpop.permute.xlu0 %79
    %vm81 = vcmask 982016
    %v82 = vsel %vm81, %v70, %v72
    %v83 = vsel %vm81, %v74, %v76
    %v84 = vsel %vm81, %v78, %v80
    %91 = vrot.lane.b32.xlu0 %v35, 119
    %v92 = vpop.permute.xlu0 %91
    %93 = vrot.lane.b32.xlu0 %v36, 119
    %v94 = vpop.permute.xlu0 %93
    %95 = vrot.lane.b32.xlu0 %v37, 119
    %v96 = vpop.permute.xlu0 %95
    %97 = vrot.lane.b32.xlu0 %v38, 119
    %v98 = vpop.permute.xlu0 %97
    %99 = vrot.lane.b32.xlu0 %v39, 119
    %v100 = vpop.permute.xlu0 %99
    %101 = vrot.lane.b32.xlu0 %v40, 119
    %v102 = vpop.permute.xlu0 %101
    %vm103 = vcmask 973824
    %v104 = vsel %vm103, %v92, %v94
    %v105 = vsel %vm103, %v96, %v98
    %v106 = vsel %vm103, %v100, %v102
    %v113 = vld [vmem:[%s1] sm:$0xff]
    %v114 = vld [vmem:[%s1 + $0x8] sm:$0xff]
    %v115 = vld [vmem:[%s2] sm:$0xff]
    %v116 = vld [vmem:[%s2 + $0x8] sm:$0xff]
    %118 = vset.pattern.permute.xlu0 0
    %119 = vperm.xlu0 %118, %v115
    %v120 = vpop.permute.xlu0 %119
    %123 = vset.pattern.permute.xlu0 0
    %124 = vperm.xlu0 %123, %v116
    %v125 = vpop.permute.xlu0 %124
    %vm127 = vcmask 785408
    %v129 = vsel %vm127, %v113, 0
    %v132 = vsel %vm127, %v114, 0
    %134 = vmatprep.subr.mxu0 %v36
    %135 = vmatpush1.msra.mxu0 %v35
    %136 = vmatprep.subr.mxu0 %v38
    %137 = vmatpush1.msra.mxu0 %v37
    %138 = vmatprep.subr.mxu0 %v40
    %139 = vmatpush1.msra.mxu0 %v39
    %140 = vmatprep.subr.mxu0 %v50
    %141 = vmatpush1.msra.mxu0 %v60
    %142 = vmatprep.subr.mxu0 %v54
    %143 = vmatpush1.msra.mxu0 %v61
    %144 = vmatprep.subr.mxu0 %v58
    %145 = vmatpush1.msra.mxu0 %v62
    %146 = vmatprep.subr.mxu0 %v72
    %147 = vmatpush1.msra.mxu0 %v82
    %148 = vmatprep.subr.mxu0 %v76
    %149 = vmatpush1.msra.mxu0 %v83
    %150 = vmatprep.subr.mxu0 %v80
    %151 = vmatpush1.msra.mxu0 %v84
    %152 = vmatprep.subr.mxu0 %v94
    %153 = vmatpush1.msra.mxu0 %v104
    %154 = vmatprep.subr.mxu0 %v98
    %155 = vmatpush1.msra.mxu0 %v105
    %156 = vmatprep.subr.mxu0 %v102
    %157 = vmatpush1.msra.mxu0 %v106
    %158 = vmatprep.subr.mxu0 0.0
    %159 = vmatpush1.msra.mxu0 0.0
    %160 = vmatprep.subr.mxu0 0.0
    %161 = vmatpush1.msra.mxu0 0.0
    %162 = vmatprep.subr.mxu0 0.0
    %163 = vmatpush1.msra.mxu0 0.0
    %164 = vmatprep.subr.mxu0 0.0
    %165 = vmatpush1.msra.mxu0 0.0
    %166 = vmatprep.subr.mxu0 0.0
    %167 = vmatpush1.msra.mxu0 0.0
    %168 = vmatprep.subr.mxu0 0.0
    %169 = vmatpush1.msra.mxu0 0.0
    %170 = vmatprep.subr.mxu0 0.0
    %171 = vmatpush1.msra.mxu0 0.0
    %172 = vmatprep.subr.mxu0 0.0
    %173 = vmatpush1.msra.mxu0 0.0
    %174 = vmatprep.subr.mxu0 0.0
    %175 = vmatpush1.msra.mxu0 0.0
    %176 = vmatprep.subr.mxu0 0.0
    %177 = vmatpush1.msra.mxu0 0.0
    %178 = vmatprep.subr.mxu0 0.0
    %179 = vmatpush1.msra.mxu0 0.0
    %180 = vmatprep.subr.mxu0 0.0
    %181 = vmatpush1.msra.mxu0 0.0
    %182 = vmatprep.subr.mxu0 0.0
    %183 = vmatpush1.msra.mxu0 0.0
    %184 = vmatprep.subr.mxu0 0.0
    %185 = vmatpush1.msra.mxu0 0.0
    %186 = vmatprep.subr.mxu0 0.0
    %187 = vmatpush1.msra.mxu0 0.0
    %188 = vmatprep.subr.mxu0 0.0
    %189 = vmatpush1.msra.mxu0 0.0
    %190 = vmatprep.subr.mxu0 0.0
    %191 = vmatpush1.msra.mxu0 0.0
    %192 = vmatprep.subr.mxu0 0.0
    %193 = vmatpush1.msra.mxu0 0.0
    %194 = vmatprep.subr.mxu0 0.0
    %195 = vmatpush1.msra.mxu0 0.0
    %196 = vmatprep.subr.mxu0 0.0
    %197 = vmatpush1.msra.mxu0 0.0
    %198 = vmatprep.mubr.f32.mxu0 0.0
    %199 = vmatmul.mubr.f32.gmra.mrb[0].mxu0 %v129
    %v200 = vpop.f32.mrb[0].mxu0
    %v201 = vadd.f32 %v120, %v200
    %v202 = vpop.f32.mrb[0].mxu0
    %v203 = vadd.f32 %v120, %v202
    %204 = vmatprep.mubr.f32.mxu0 0.0
    %205 = vmatmul.mubr.f32.gmra.mrb[0].mxu0 %v132
    %v206 = vpop.f32.mrb[0].mxu0
    %v207 = vadd.f32 %v125, %v206
    %v208 = vpop.f32.mrb[0].mxu0
    %v209 = vadd.f32 %v125, %v208
    %210 = vdwg.mxu0
    %v211 = vmax.f32 %v201, 0.0
    %v212 = vmax.f32 %v203, 0.0
    %v213 = vmax.f32 %v207, 0.0
    %v214 = vmax.f32 %v209, 0.0
    %215 = vst [vmem:[#allocation2] sm:$0xff] %v211
    %vm216 = vcmask 130048
    %217 = vst.msk [vmem:[#allocation2 + $0x8] sm:$0xff] %vm216, %v212
    %218 = vst [vmem:[#allocation2 + $0x10] sm:$0xff] %v213
    %219 = vst.msk [vmem:[#allocation2 + $0x18] sm:$0xff] %vm216, %v214
    %v220 = vld [vmem:[#allocation2] sm:$0xff]
    %v221 = vld [vmem:[#allocation2 + $0x10] sm:$0xff]
    %v222 = vld [vmem:[#allocation2 + $0x8] sm:$0xff]
    %v223 = vld [vmem:[#allocation2 + $0x18] sm:$0xff]
    %228 = vrot.lane.b32.xlu0 %v220, 127
    %v229 = vpop.permute.xlu0 %228
    %230 = vrot.lane.b32.xlu0 %v222, 127
    %v231 = vpop.permute.xlu0 %230
    %232 = vrot.lane.b32.xlu0 %v221, 127
    %v233 = vpop.permute.xlu0 %232
    %234 = vrot.lane.b32.xlu0 %v223, 127
    %v235 = vpop.permute.xlu0 %234
    %v236 = vsel %vm59, %v229, %v231
    %v237 = vsel %vm59, %v233, %v235
    %240 = vrot.lane.b32.xlu0 %v220, 120
    %v241 = vpop.permute.xlu0 %240
    %242 = vrot.lane.b32.xlu0 %v222, 120
    %v243 = vpop.permute.xlu0 %242
    %244 = vrot.lane.b32.xlu0 %v221, 120
    %v245 = vpop.permute.xlu0 %244
    %246 = vrot.lane.b32.xlu0 %v223, 120
    %v247 = vpop.permute.xlu0 %246
    %v248 = vsel %vm81, %v241, %v243
    %v249 = vsel %vm81, %v245, %v247
    %252 = vrot.lane.b32.xlu0 %v220, 119
    %v253 = vpop.permute.xlu0 %252
    %254 = vrot.lane.b32.xlu0 %v222, 119
    %v255 = vpop.permute.xlu0 %254
    %256 = vrot.lane.b32.xlu0 %v221, 119
    %v257 = vpop.permute.xlu0 %256
    %258 = vrot.lane.b32.xlu0 %v223, 119
    %v259 = vpop.permute.xlu0 %258
    %v260 = vsel %vm103, %v253, %v255
    %v261 = vsel %vm103, %v257, %v259
    %v264 = vld [vmem:[%s3] sm:$0xff]
    %v265 = vld [vmem:[%s3 + $0x8] sm:$0xff]
    %v266 = vld [vmem:[%s4] sm:$0xff]
    %v267 = vld [vmem:[%s4 + $0x8] sm:$0xff]
    %269 = vset.pattern.permute.xlu0 0
    %270 = vperm.xlu0 %269, %v266
    %v271 = vpop.permute.xlu0 %270
    %274 = vset.pattern.permute.xlu0 0
    %275 = vperm.xlu0 %274, %v267
    %v276 = vpop.permute.xlu0 %275
    %vm278 = vcmask 523264
    %v280 = vsel %vm278, %v264, 0
    %v283 = vsel %vm278, %v265, 0
    %285 = vmatprep.subr.mxu0 0.0
    %286 = vmatpush1.msra.mxu0 %v220
    %287 = vmatprep.subr.mxu0 0.0
    %288 = vmatpush1.msra.mxu0 %v221
    %289 = vmatprep.subr.mxu0 0.0
    %290 = vmatpush1.msra.mxu0 %v236
    %291 = vmatprep.subr.mxu0 0.0
    %292 = vmatpush1.msra.mxu0 %v237
    %293 = vmatprep.subr.mxu0 0.0
    %294 = vmatpush1.msra.mxu0 %v248
    %295 = vmatprep.subr.mxu0 0.0
    %296 = vmatpush1.msra.mxu0 %v249
    %297 = vmatprep.subr.mxu0 0.0
    %298 = vmatpush1.msra.mxu0 %v260
    %299 = vmatprep.subr.mxu0 0.0
    %300 = vmatpush1.msra.mxu0 %v261
    %301 = vmatprep.subr.mxu0 0.0
    %302 = vmatpush1.msra.mxu0 0.0
    %303 = vmatprep.subr.mxu0 0.0
    %304 = vmatpush1.msra.mxu0 0.0
    %305 = vmatprep.subr.mxu0 0.0
    %306 = vmatpush1.msra.mxu0 0.0
    %307 = vmatprep.subr.mxu0 0.0
    %308 = vmatpush1.msra.mxu0 0.0
    %309 = vmatprep.subr.mxu0 0.0
    %310 = vmatpush1.msra.mxu0 0.0
    %311 = vmatprep.subr.mxu0 0.0
    %312 = vmatpush1.msra.mxu0 0.0
    %313 = vmatprep.subr.mxu0 0.0
    %314 = vmatpush1.msra.mxu0 0.0
    %315 = vmatprep.subr.mxu0 0.0
    %316 = vmatpush1.msra.mxu0 0.0
    %317 = vmatprep.subr.mxu0 0.0
    %318 = vmatpush1.msra.mxu0 0.0
    %319 = vmatprep.subr.mxu0 0.0
    %320 = vmatpush1.msra.mxu0 0.0
    %321 = vmatprep.subr.mxu0 0.0
    %322 = vmatpush1.msra.mxu0 0.0
    %323 = vmatprep.subr.mxu0 0.0
    %324 = vmatpush1.msra.mxu0 0.0
    %325 = vmatprep.subr.mxu0 0.0
    %326 = vmatpush1.msra.mxu0 0.0
    %327 = vmatprep.subr.mxu0 0.0
    %328 = vmatpush1.msra.mxu0 0.0
    %329 = vmatprep.subr.mxu0 0.0
    %330 = vmatpush1.msra.mxu0 0.0
    %331 = vmatprep.subr.mxu0 0.0
    %332 = vmatpush1.msra.mxu0 0.0
    %333 = vmatprep.subr.mxu0 0.0
    %334 = vmatpush1.msra.mxu0 0.0
    %335 = vmatprep.subr.mxu0 0.0
    %336 = vmatpush1.msra.mxu0 0.0
    %337 = vmatprep.subr.mxu0 0.0
    %338 = vmatpush1.msra.mxu0 0.0
    %339 = vmatprep.subr.mxu0 0.0
    %340 = vmatpush1.msra.mxu0 0.0
    %341 = vmatprep.subr.mxu0 0.0
    %342 = vmatpush1.msra.mxu0 0.0
    %343 = vmatprep.subr.mxu0 0.0
    %344 = vmatpush1.msra.mxu0 0.0
    %345 = vmatprep.subr.mxu0 0.0
    %346 = vmatpush1.msra.mxu0 0.0
    %347 = vmatprep.subr.mxu0 0.0
    %348 = vmatpush1.msra.mxu0 0.0
    %349 = vmatprep.mubr.f32.mxu0 0.0
    %350 = vmatmul.mubr.f32.gmra.mrb[0].mxu0 %v280
    %v351 = vpop.f32.mrb[0].mxu0
    %v352 = vadd.f32 %v271, %v351
    %v353 = vpop.f32.mrb[0].mxu0
    %354 = vmatprep.mubr.f32.mxu0 0.0
    %355 = vmatmul.mubr.f32.gmra.mrb[0].mxu0 %v283
    %v356 = vpop.f32.mrb[0].mxu0
    %v357 = vadd.f32 %v276, %v356
    %v358 = vpop.f32.mrb[0].mxu0
    %359 = vdwg.mxu0
    %v360 = vmax.f32 %v352, 0.0
    %v361 = vmax.f32 %v357, 0.0
    %362 = vst [vmem:[#allocation6] sm:$0xff] %v360
    %363 = vst [vmem:[#allocation6 + $0x8] sm:$0xff] %v361
    // Predicated region
    $region26: #{tpu_custom_call.1} parent=1 // pred_check
      _
    $region27: #{tpu_custom_call.1} parent=1 // pred_check_branch
      %365 = sbr.rel (0) target = $region29
    $region28: #{tpu_custom_call.1} parent=1 // pred_region
      %s367 = ssub.s32 256, 256
      %368 = vsyncadd [#allocation5], %s367
      %s369 = sshll.u32 [#allocation6], 4
      %s370 = int_to_ptr.vmem [resolvable:$true] %s369
      %375 = dma.vmem_to_hbm [thread:$0]  %s370, 256, %s5, [#allocation5], 128, 128, 8
    $region29: #{tpu_custom_call.1} parent=1 // pred_fallthru
      _
    // Predicated region
    $region30: #{tpu_custom_call.1} parent=1 // pred_check
      _
    $region31: #{tpu_custom_call.1} parent=1 // pred_check_branch
      %377 = sbr.rel (0) target = $region33
    $region32: #{tpu_custom_call.1} parent=1 // pred_region
      %378 = dma.done [#allocation5], 256
    $region33: #{tpu_custom_call.1} parent=1 // pred_fallthru
      _
    %379 = vsyncpa [#allocation4], 1
    %380 = vsyncpa [#allocation5], 1

</llo_original>
